<compile_context>
chip_gen: v7x
topology: tpu7x:2x2x1
jax: 0.10.0
libtpu: 0.0.40
codegen_flags: <defaults>
</compile_context>

<pallas_src>
import functools

import jax
import jax.numpy as jnp
from jax.experimental import pallas as pl
from jax.experimental.pallas import tpu as pltpu


def _round_up(n, m):
    return ((n + m - 1) // m) * m


def _tpu_vmem_budget_bytes():
    """Usable VMEM budget for the tile plan (generation-aware).

    v5e/v6e have 128 MiB per TensorCore, v7x has 64 MiB; leave ~16 MiB of
    headroom for Mosaic internal scratch / semaphores.  Falls back to a
    v7x-safe 48 MiB if the query is unavailable."""
    cap = None
    try:
        cap = getattr(pltpu.get_tpu_info(), "vmem_capacity_bytes", None)
    except Exception:
        cap = None
    if not cap:
        cap = 64 * 1024 * 1024
    return max(int(cap) - 16 * 1024 * 1024, 32 * 1024 * 1024)


def _default_num_splits():
    """2-way parallel M-split only where two TensorCores exist (v7x); on 1-TC
    chips (v5e/v6e) the split is a serial loop plus an extra (K,K) f32
    writeback + external sum, so default to 1 there."""
    try:
        kind = jax.devices()[0].device_kind.lower()
    except Exception:
        return 1
    return 2 if "v7" in kind else 1


def _autocorr_kernel(x_ref, *rest, m_total, tm, steps, normalize, needs_mask,
                     split_rhs, scale):
    """Grid = (splits, col_tiles, row_slabs).  Each step accumulates
    X_slab^T @ X_slab[:, col_tile] (f32) into the VMEM scratch accumulator;
    the accumulator is zeroed at the first reduction step and written to the
    output block (optionally scaled by 1/M and cast to bf16) at the last."""
    if split_rhs:
        rhs_ref, out_ref, acc_ref = rest
    else:
        out_ref, acc_ref = rest
        rhs_ref = None

    s = pl.program_id(2)

    @pl.when(s == 0)
    def _init():
        acc_ref[...] = jnp.zeros_like(acc_ref)

    def _accumulate(lhs, rhs):
        # lhs: (tm, K) bf16 row slab; rhs: (tm, tn) bf16 column slice, or None
        # meaning "reuse lhs" (avoids streaming the input twice when tn == K).
        if normalize == "L2_norm":
            lf = lhs.astype(jnp.float32)
            sq = jnp.sum(lf * lf, axis=1, keepdims=True)   # per-row ||x||^2, f32
            inv = jax.lax.rsqrt(sq)                        # EUP slot, ~free
            keep = sq > 0.0                                # zero-norm rows -> 0
            lhs = jnp.where(keep, (lf * inv).astype(jnp.bfloat16),
                            jnp.zeros_like(lhs))
            if rhs is not None:
                rf = rhs.astype(jnp.float32)
                rhs = jnp.where(keep, (rf * inv).astype(jnp.bfloat16),
                                jnp.zeros_like(rhs))
        rhs_use = lhs if rhs is None else rhs
        # X^T X without materializing a transpose: contract dim 0 of both
        # operands (MXU-native transposed-LHS feed), f32 accumulation.
        acc_ref[...] += jax.lax.dot_general(
            lhs, rhs_use,
            dimension_numbers=(((0,), (0,)), ((), ())),
            preferred_element_type=jnp.float32)

    def _load(ref):
        # bf16 cast happens in-register (matches torch `.to(torch.bfloat16)`).
        return ref[...].astype(jnp.bfloat16)

    if needs_mask:
        p = pl.program_id(0)
        row0 = (p * steps + s) * tm
        in_bounds = row0 < m_total
        is_full = (row0 + tm) <= m_total

        @pl.when(jnp.logical_and(in_bounds, is_full))
        def _full_tile():        # steady state: no iota / select
            _accumulate(_load(x_ref), _load(rhs_ref) if split_rhs else None)

        @pl.when(jnp.logical_and(in_bounds, jnp.logical_not(is_full)))
        def _ragged_tile():      # at most one step per split
            local = jax.lax.broadcasted_iota(jnp.int32, (tm, 1), 0)
            valid = (row0 + local) < m_total
            lhs = jnp.where(valid, x_ref[...], 0).astype(jnp.bfloat16)
            rhs = (jnp.where(valid, rhs_ref[...], 0).astype(jnp.bfloat16)
                   if split_rhs else None)
            _accumulate(lhs, rhs)
        # fully-OOB (clamped) blocks: row0 >= m_total -> matmul skipped entirely
    else:
        _accumulate(_load(x_ref), _load(rhs_ref) if split_rhs else None)

    @pl.when(s == steps - 1)
    def _finalize():
        acc = acc_ref[...]
        if scale is not None:
            acc = acc * scale      # f32 scale before the single bf16 cast
        out_ref[...] = acc.astype(out_ref.dtype)


_TARGET_SLAB_BYTES = 4 << 20   # per input slab buffer (pipeline double-buffers)


def compute_batched_autocorrelation_matrix(x, normalize=None, *, tm=None, tn=None,
                                           num_splits=None, input_buffers=None,
                                           allow_input_fusion=False):
    """C = X^T X / M (bf16), X = x flattened over all leading dims (K last),
    with optional per-row L2 normalization.  See module docstring for the
    tiling / budgeting strategy."""
    if normalize not in (None, "L2_norm"):
        raise ValueError(f"Unknown Normalization Technique: {normalize}")

    X = x.reshape(-1, x.shape[-1])
    M, K = X.shape
    in_itemsize = X.dtype.itemsize
    budget = _tpu_vmem_budget_bytes()
    n_buf = 2 if input_buffers is None else max(int(input_buffers), 2)

    # ---- row-slab tile: K-aware so each slab is ~4 MiB (big DMAs, deep MXU
    # contraction), multiple of 256, clamped to the actual M.
    if tm is None:
        tm_sel = _TARGET_SLAB_BYTES // max(K * in_itemsize, 1)
        tm_sel = _round_up(int(min(max(tm_sel, 512), 4096)), 256)
    else:
        tm_sel = _round_up(max(int(tm), 8), 8)
    tm_sel = max(min(tm_sel, _round_up(M, 8)), 8)

    # ---- column tile / VMEM fit
    def plan_bytes(tm_, tn_):
        b = n_buf * tm_ * K * in_itemsize                 # LHS slab buffers
        if tn_ != K:
            b += n_buf * tm_ * tn_ * in_itemsize          # RHS column-slice buffers
        b += K * tn_ * 4                                  # f32 accumulator scratch
        b += 2 * K * tn_ * 4                              # output block buffers
        return b

    slack = 4 << 20
    tn_sel = int(tn) if tn is not None else K
    if tn is None:
        while plan_bytes(tm_sel, tn_sel) + slack > budget and tm_sel > 256:
            tm_sel = max(256, tm_sel - 256)
        if plan_bytes(tm_sel, tn_sel) + slack > budget:
            # (K,K) f32 accumulator alone is too big (large K on v7x): tile the
            # output columns.  Costs one extra LHS stream per extra column tile
            # but keeps the plan legal in 64 MiB VMEM.
            for cand in (2048, 1024, 512, 256, 128):
                if cand < K and K % cand == 0 and \
                        plan_bytes(tm_sel, cand) + slack <= budget:
                    tn_sel = cand
                    break
            # TODO(synk): if no 128-multiple divisor of K fits, an HBM-resident
            # accumulator would be needed; not required for realistic K.
    split_rhs = tn_sel != K
    n_j = K // tn_sel if split_rhs else 1

    # ---- grid
    total_blocks = pl.cdiv(M, tm_sel)
    req_splits = _default_num_splits() if num_splits is None else int(num_splits)
    splits = max(1, min(req_splits, total_blocks))
    steps = pl.cdiv(total_blocks, splits)
    has_oob = splits * steps > total_blocks
    needs_mask = splits * steps * tm_sel != M
    last_block = total_blocks - 1

    if has_oob:
        # Clamp fully out-of-bounds block indices onto a valid block; the
        # kernel skips their contribution via the in-bounds gate.
        def lhs_map(p, j, s): return (jnp.minimum(p * steps + s, last_block), 0)
        def rhs_map(p, j, s): return (jnp.minimum(p * steps + s, last_block), j)
    else:
        def lhs_map(p, j, s): return (p * steps + s, 0)
        def rhs_map(p, j, s): return (p * steps + s, j)

    # splits == 1: scale + bf16 cast happen inside the kernel finalize.
    # splits > 1 (v7x megacore): f32 partials, combined in f32 outside.
    in_kernel_finalize = (splits == 1)
    out_dtype = jnp.bfloat16 if in_kernel_finalize else jnp.float32

    kernel = functools.partial(
        _autocorr_kernel,
        m_total=M, tm=tm_sel, steps=steps, normalize=normalize,
        needs_mask=needs_mask, split_rhs=split_rhs,
        scale=(1.0 / M) if in_kernel_finalize else None)

    spec_kwargs = {}
    if input_buffers is not None and int(input_buffers) > 2:
        spec_kwargs["pipeline_mode"] = pl.Buffered(int(input_buffers))
    in_specs = [pl.BlockSpec((tm_sel, K), lhs_map, **spec_kwargs)]
    operands = [X]
    if split_rhs:
        in_specs.append(pl.BlockSpec((tm_sel, tn_sel), rhs_map, **spec_kwargs))
        operands.append(X)

    out_itemsize = jnp.dtype(out_dtype).itemsize
    vmem_plan = (n_buf * tm_sel * K * in_itemsize
                 + (n_buf * tm_sel * tn_sel * in_itemsize if split_rhs else 0)
                 + K * tn_sel * 4
                 + 2 * K * tn_sel * out_itemsize
                 + (4 << 20))
    vmem_limit = int(min(max(vmem_plan, 16 << 20), budget))

    compiler_kwargs = dict(
        dimension_semantics=("parallel", "parallel", "arbitrary"),
        vmem_limit_bytes=vmem_limit)
    if allow_input_fusion:
        compiler_kwargs["allow_input_fusion"] = [True] * len(operands)

    out = pl.pallas_call(
        kernel,
        out_shape=jax.ShapeDtypeStruct((splits, K, K), out_dtype),
        grid_spec=pltpu.PrefetchScalarGridSpec(
            num_scalar_prefetch=0,
            grid=(splits, n_j, steps),
            in_specs=in_specs,
            # leading split dim squeezed -> out_ref is (K, tn); written once
            # per (split, col-tile) in the kernel finalize.
            out_specs=pl.BlockSpec((None, K, tn_sel), lambda p, j, s: (p, 0, j)),
            scratch_shapes=[pltpu.VMEM((K, tn_sel), jnp.float32)],
        ),
        compiler_params=pltpu.CompilerParams(**compiler_kwargs),
    )(*operands)

    if in_kernel_finalize:
        return out[0]
    return (out.sum(axis=0) * (1.0 / M)).astype(jnp.bfloat16)


class TensorStatisticsEstimator:
    """JAX port of espace TensorStatisticsEstimator (forward pass only).

    statistic='autocorrelation' path: accumulates C = X^T X / M into a buffer
    and returns the input unchanged.
    """

    def __init__(self, module_name, statistic="autocorrelation", normalize="L2_norm"):
        self.module_name = module_name
        self.accumulated_autocorrelation_matrix = None
        self.elapsed_batches = 0
        self.statistic = statistic
        self.normalize = normalize
        # TODO(synk): 'grad_autocorrelation' requires a custom_vjp hooking the
        # backward pass; only the forward-statistic path is implemented here.

    def __call__(self, x):
        self.elapsed_batches += 1
        if ("autocorrelation" in self.statistic
                and self.statistic != "grad_autocorrelation"):
            batched = compute_batched_autocorrelation_matrix(x, self.normalize)
            if self.accumulated_autocorrelation_matrix is None:
                self.accumulated_autocorrelation_matrix = batched
            else:
                # bf16 + bf16, matching the torch reference buffer semantics.
                self.accumulated_autocorrelation_matrix = (
                    self.accumulated_autocorrelation_matrix + batched
                )
        return x


def _reference_autocorr(x, normalize=None):
    """Pure-JAX reference mirroring the torch semantics, for correctness checks."""
    X = x.reshape(-1, x.shape[-1]).astype(jnp.bfloat16)
    M = X.shape[0]
    if normalize == "L2_norm":
        norms = jnp.sqrt(
            jnp.sum(jnp.square(X.astype(jnp.float32)), axis=1, keepdims=True)
        ).astype(jnp.bfloat16)
        X = jnp.nan_to_num(X / norms)
    C = jnp.dot(X.T, X, preferred_element_type=jnp.float32)
    return (C / M).astype(jnp.bfloat16)


if __name__ == "__main__":
    root = jax.random.PRNGKey(0)
    k1, k2, k3 = jax.random.split(root, 3)

    # --- Test 1: NHWC-style activation, K=128, M=128.  Exercises the K-aware
    # tm, the VMEM-scratch accumulator and the in-kernel 1/M + bf16 finalize.
    x = jax.random.normal(k1, (2, 4, 16, 128), dtype=jnp.float32)
    est = TensorStatisticsEstimator("layer0.act", statistic="autocorrelation",
                                    normalize="L2_norm")
    y1 = est(x)
    y2 = est(x * 0.5)
    acc = jax.block_until_ready(est.accumulated_autocorrelation_matrix)
    assert y1.shape == x.shape and y1.dtype == x.dtype        # forward is identity
    assert acc.shape == (128, 128) and acc.dtype == jnp.bfloat16
    ref = _reference_autocorr(x, "L2_norm") + _reference_autocorr(x * 0.5, "L2_norm")
    err = jnp.max(jnp.abs(acc.astype(jnp.float32) - ref.astype(jnp.float32)))
    assert float(err) < 2e-2, f"L2_norm path max abs err {float(err)}"

    # --- Test 2: ragged M + forced 2-way reduction split (OOB-block clamp,
    # last-tile mask, f32 partial combine).  M = 80, K = 128.
    x2 = jax.random.normal(k2, (2, 40, 128), dtype=jnp.float32)
    got2 = jax.block_until_ready(
        compute_batched_autocorrelation_matrix(x2, None, tm=32, num_splits=2))
    ref2 = _reference_autocorr(x2, None)
    err2 = jnp.max(jnp.abs(got2.astype(jnp.float32) - ref2.astype(jnp.float32)))
    assert got2.shape == (128, 128) and got2.dtype == jnp.bfloat16
    assert float(err2) < 2e-2, f"masked/split path max abs err {float(err2)}"

    # --- Test 3: forced output column-tiling (tn < K, the large-K / v7x path)
    # combined with a ragged last row tile and L2 normalization.  M = 40, K = 256.
    x3 = jax.random.normal(k3, (5, 8, 256), dtype=jnp.float32)
    got3 = jax.block_until_ready(
        compute_batched_autocorrelation_matrix(x3, "L2_norm", tm=32, tn=128,
                                               num_splits=1))
    ref3 = _reference_autocorr(x3, "L2_norm")
    err3 = jnp.max(jnp.abs(got3.astype(jnp.float32) - ref3.astype(jnp.float32)))
    assert got3.shape == (256, 256) and got3.dtype == jnp.bfloat16
    assert float(err3) < 2e-2, f"column-tiled path max abs err {float(err3)}"

    print("KERNEL_OK")
</pallas_src>

<mosaic_0001>
module attributes {stable_mosaic.version = 11 : i64} {
  func.func @_autocorr_kernel(%arg0: i32, %arg1: i32, %arg2: i32, %arg3: memref<128x128xf32, #tpu.memory_space<vmem>>, %arg4: memref<1x128x128xbf16, #tpu.memory_space<vmem>>, %arg5: memref<128x128xf32, #tpu.memory_space<vmem>>) attributes {dimension_semantics = [#tpu.dimension_semantics<parallel>, #tpu.dimension_semantics<parallel>, #tpu.dimension_semantics<arbitrary>], iteration_bounds = array<i64: 1, 1, 1>, scalar_prefetch = 0 : i64, scratch_operands = 1 : i64, tpu.core_type = #tpu.core_type<tc>, window_params = [{transform_indices = @transform_0, window_bounds = array<i64: 128, 128>}, {transform_indices = @transform_1, window_bounds = array<i64: 1, 128, 128>}]} {
    %c0_i32 = arith.constant 0 : i32
    %0 = arith.cmpi eq, %arg2, %c0_i32 : i32
    %1 = arith.extui %0 : i1 to i32
    %c0_i32_0 = arith.constant 0 : i32
    %2 = arith.cmpi ne, %1, %c0_i32_0 : i32
    scf.if %2 {
      %cst_11 = arith.constant 0.000000e+00 : f32
      %26 = vector.broadcast %cst_11 : f32 to vector<128x128xf32>
      %c0_12 = arith.constant 0 : index
      %c0_13 = arith.constant 0 : index
      %27 = vector.load %arg5[%c0_12, %c0_13] : memref<128x128xf32, #tpu.memory_space<vmem>>, vector<128x128xf32>
      tpu.vector_store %arg5[%c0_12, %c0_13], %26 {strides = array<i32>} : memref<128x128xf32, #tpu.memory_space<vmem>>, vector<128x128xf32>,
    } else {
    }
    %c0 = arith.constant 0 : index
    %c0_1 = arith.constant 0 : index
    %3 = vector.load %arg3[%c0, %c0_1] : memref<128x128xf32, #tpu.memory_space<vmem>>, vector<128x128xf32>
    %4 = arith.truncf %3 : vector<128x128xf32> to vector<128x128xbf16>
    %5 = arith.extf %4 : vector<128x128xbf16> to vector<128x128xf32>
    %6 = arith.mulf %5, %5 : vector<128x128xf32>
    %cst = arith.constant dense<0.000000e+00> : vector<128xf32>
    %7 = vector.multi_reduction <add>, %6, %cst [1] : vector<128x128xf32> to vector<128xf32>
    %8 = vector.shape_cast %7 : vector<128xf32> to vector<128x1xf32>
    %9 = math.rsqrt %8 : vector<128x1xf32>
    %cst_2 = arith.constant 0.000000e+00 : f32
    %10 = vector.broadcast %cst_2 : f32 to vector<128x1xf32>
    %11 = arith.cmpf ogt, %8, %10 : vector<128x1xf32>
    %12 = vector.broadcast %9 : vector<128x1xf32> to vector<128x128xf32>
    %13 = arith.mulf %5, %12 : vector<128x128xf32>
    %14 = arith.truncf %13 : vector<128x128xf32> to vector<128x128xbf16>
    %cst_3 = arith.constant 0.000000e+00 : bf16
    %15 = vector.broadcast %cst_3 : bf16 to vector<128x128xbf16>
    %16 = vector.shape_cast %11 : vector<128x1xi1> to vector<128x1xi1>
    %17 = vector.broadcast %16 : vector<128x1xi1> to vector<128x128xi1>
    %18 = arith.select %17, %14, %15 : vector<128x128xi1>, vector<128x128xbf16>
    %c0_4 = arith.constant 0 : index
    %c0_5 = arith.constant 0 : index
    %19 = vector.load %arg5[%c0_4, %c0_5] : memref<128x128xf32, #tpu.memory_space<vmem>>, vector<128x128xf32>
    %cst_6 = arith.constant dense<0.000000e+00> : vector<128x128xf32>
    %20 = tpu.matmul %18, %18, %cst_6 {dimension_numbers = #tpu.dot_dimension_numbers<[0], [0], [1], [1], [0, 1, 1, 1], [], []>} : vector<128x128xbf16>, vector<128x128xbf16>, vector<128x128xf32> -> vector<128x128xf32>
    %21 = arith.addf %19, %20 : vector<128x128xf32>
    %c0_7 = arith.constant 0 : index
    %c0_8 = arith.constant 0 : index
    %22 = vector.load %arg5[%c0_7, %c0_8] : memref<128x128xf32, #tpu.memory_space<vmem>>, vector<128x128xf32>
    tpu.vector_store %arg5[%c0_7, %c0_8], %21 {strides = array<i32>} : memref<128x128xf32, #tpu.memory_space<vmem>>, vector<128x128xf32>,
    %c0_i32_9 = arith.constant 0 : i32
    %23 = arith.cmpi eq, %arg2, %c0_i32_9 : i32
    %24 = arith.extui %23 : i1 to i32
    %c0_i32_10 = arith.constant 0 : i32
    %25 = arith.cmpi ne, %24, %c0_i32_10 : i32
    scf.if %25 {
      %c0_11 = arith.constant 0 : index
      %c0_12 = arith.constant 0 : index
      %26 = vector.load %arg5[%c0_11, %c0_12] : memref<128x128xf32, #tpu.memory_space<vmem>>, vector<128x128xf32>
      %cst_13 = arith.constant 7.812500e-03 : f32
      %27 = vector.broadcast %cst_13 : f32 to vector<128x128xf32>
      %28 = arith.mulf %26, %27 : vector<128x128xf32>
      %29 = arith.truncf %28 : vector<128x128xf32> to vector<128x128xbf16>
      %c0_14 = arith.constant 0 : index
      %c0_15 = arith.constant 0 : index
      %c0_16 = arith.constant 0 : index
      %30 = vector.load %arg4[%c0_14, %c0_15, %c0_16] : memref<1x128x128xbf16, #tpu.memory_space<vmem>>, vector<1x128x128xbf16>
      %31 = vector.shape_cast %30 : vector<1x128x128xbf16> to vector<128x128xbf16>
      %32 = vector.shape_cast %29 : vector<128x128xbf16> to vector<1x128x128xbf16>
      tpu.vector_store %arg4[%c0_14, %c0_15, %c0_16], %32 {strides = array<i32>} : memref<1x128x128xbf16, #tpu.memory_space<vmem>>, vector<1x128x128xbf16>,
    } else {
    }
    return
  }
  func.func @transform_0(%arg0: i32, %arg1: i32, %arg2: i32) -> (i32, i32) {
    %c1_i32 = arith.constant 1 : i32
    %0 = arith.muli %arg0, %c1_i32 : i32
    %1 = arith.addi %0, %arg2 : i32
    %c0_i32 = arith.constant 0 : i32
    %c0_i32_0 = arith.constant 0 : i32
    return %1, %c0_i32 : i32, i32
  }
  func.func @transform_1(%arg0: i32, %arg1: i32, %arg2: i32) -> (i32, i32, i32) {
    %c0_i32 = arith.constant 0 : i32
    %c0_i32_0 = arith.constant 0 : i32
    return %arg0, %c0_i32, %arg1 : i32, i32, i32
  }
}

</mosaic_0001>

<llo_original>
// kernel: tpu_custom_call.1
$region0: #{tpu_custom_call.1}
  #allocation0 [shape = 'u32[]', space=smem, size = 0x4, offset = 0x4, fixed_abs, tag = 'smem constant byte address 0x4 - core index']
  #allocation1 [shape = 'u32[144,128]{1,0:T(1,128)}', space=vmem, size = 0x12000, scoped, tag = 'internal scratch']
  #allocation2 [shape = 'f32[128,128]{1,0:T(8,128)}', space=vmem, size = 0x10000, scoped, tag = 'scratch operand']
  %s0 = inlined_call_operand.hbm [shape: f32[128,128], index: 0, kind: input, shape index: {}]
  %s1 = inlined_call_operand.hbm [shape: bf16[1,128,128], index: 1, kind: output, shape index: {}]
  %s2 = sld [smem:[#allocation0]]
  $region26: #{tpu_custom_call.1} parent=0
    _
  %s4 = ssub.s32 1, %s2
  %s5 = scalar_select 0, %s4, %s2
  $region1: #{tpu_custom_call.1} parent=0
    #allocation3 [shape = 'u8[65536]{0}', space=vmem, size = 0x10000, scoped, tag = 'input window, operand 0, single buffered']
    #allocation4 [shape = 's32[1]{0}', space=sflag, size = 0x4, scoped, tag = 'scoped memory for tpu_custom_call.1']
    #allocation5 [shape = 's32[1]{0}', space=sflag, size = 0x4, scoped, tag = 'scoped memory for tpu_custom_call.1']
    #allocation6 [shape = 'u8[32768]{0}', space=vmem, size = 0x8000, scoped, tag = 'output window, operand 0, single buffered']
    %6 = vsyncpa [#allocation4], 0
    %7 = vsyncpa [#allocation5], 0
    // Predicated region
    $region2: #{tpu_custom_call.1} parent=1 // pred_check
      _
    $region3: #{tpu_custom_call.1} parent=1 // pred_check_branch
      %9 = sbr.rel (0) target = $region5
    $region4: #{tpu_custom_call.1} parent=1 // pred_region
      %s10 = sadd.s32 0, 0
      %s11 = smul.u32 16, %s10
      %s13 = ssub.s32 2048, 2048
      %14 = vsyncadd [#allocation4], %s13
      %s15 = smul.addr %s11, 128
      %s16 = scalar_lea.hbm %s0, %s15
      %s17 = sshll.u32 [#allocation3], 4
      %s18 = int_to_ptr.vmem [resolvable:$true] %s17
      %23 = dma.hbm_to_vmem [thread:$0]  %s16, 2048, %s18, [#allocation4], 128, 128, 8
    $region5: #{tpu_custom_call.1} parent=1 // pred_fallthru
      _
    // Predicated region
    $region6: #{tpu_custom_call.1} parent=1 // pred_check
      _
    $region7: #{tpu_custom_call.1} parent=1 // pred_check_branch
      %25 = sbr.rel (0) target = $region9
    $region8: #{tpu_custom_call.1} parent=1 // pred_region
      %26 = dma.done [#allocation4], 2048
    $region9: #{tpu_custom_call.1} parent=1 // pred_fallthru
      _
    %s27 = sadd.s32 0, 0
    %s28 = smul.u32 16, %s27
    %p32 = scmp.eq.s32.totalorder 0, 0
    // Predicated region
    $region10: #{tpu_custom_call.1} parent=1 // pred_check
      %p33 = pneg %p32
    $region11: #{tpu_custom_call.1} parent=1 // pred_check_branch
      %35 = sbr.rel (%p33) target = $region13
    $region12: #{tpu_custom_call.1} parent=1 // pred_region
      %36 = vst [vmem:[#allocation2] sm:$0xff] 0.0
      %37 = vst [vmem:[#allocation2 + $0x8] sm:$0xff] 0.0
      %38 = vst [vmem:[#allocation2 + $0x10] sm:$0xff] 0.0
      %39 = vst [vmem:[#allocation2 + $0x18] sm:$0xff] 0.0
      %40 = vst [vmem:[#allocation2 + $0x20] sm:$0xff] 0.0
      %41 = vst [vmem:[#allocation2 + $0x28] sm:$0xff] 0.0
      %42 = vst [vmem:[#allocation2 + $0x30] sm:$0xff] 0.0
      %43 = vst [vmem:[#allocation2 + $0x38] sm:$0xff] 0.0
      %44 = vst [vmem:[#allocation2 + $0x40] sm:$0xff] 0.0
      %45 = vst [vmem:[#allocation2 + $0x48] sm:$0xff] 0.0
      %46 = vst [vmem:[#allocation2 + $0x50] sm:$0xff] 0.0
      %47 = vst [vmem:[#allocation2 + $0x58] sm:$0xff] 0.0
      %48 = vst [vmem:[#allocation2 + $0x60] sm:$0xff] 0.0
      %49 = vst [vmem:[#allocation2 + $0x68] sm:$0xff] 0.0
      %50 = vst [vmem:[#allocation2 + $0x70] sm:$0xff] 0.0
      %51 = vst [vmem:[#allocation2 + $0x78] sm:$0xff] 0.0
    $region13: #{tpu_custom_call.1} parent=1 // pred_fallthru
      _
    %v52 = vld [vmem:[#allocation3] sm:$0xff]
    %v53 = vld [vmem:[#allocation3 + $0x8] sm:$0xff]
    %v54 = vld [vmem:[#allocation3 + $0x10] sm:$0xff]
    %v55 = vld [vmem:[#allocation3 + $0x18] sm:$0xff]
    %v56 = vld [vmem:[#allocation3 + $0x20] sm:$0xff]
    %v57 = vld [vmem:[#allocation3 + $0x28] sm:$0xff]
    %v58 = vld [vmem:[#allocation3 + $0x30] sm:$0xff]
    %v59 = vld [vmem:[#allocation3 + $0x38] sm:$0xff]
    %v60 = vld [vmem:[#allocation3 + $0x40] sm:$0xff]
    %v61 = vld [vmem:[#allocation3 + $0x48] sm:$0xff]
    %v62 = vld [vmem:[#allocation3 + $0x50] sm:$0xff]
    %v63 = vld [vmem:[#allocation3 + $0x58] sm:$0xff]
    %v64 = vld [vmem:[#allocation3 + $0x60] sm:$0xff]
    %v65 = vld [vmem:[#allocation3 + $0x68] sm:$0xff]
    %v66 = vld [vmem:[#allocation3 + $0x70] sm:$0xff]
    %v67 = vld [vmem:[#allocation3 + $0x78] sm:$0xff]
    %v68 = vpack.c.bf16 %v53, %v52
    %v69 = vpack.c.bf16 %v55, %v54
    %v70 = vpack.c.bf16 %v57, %v56
    %v71 = vpack.c.bf16 %v59, %v58
    %v72 = vpack.c.bf16 %v61, %v60
    %v73 = vpack.c.bf16 %v63, %v62
    %v74 = vpack.c.bf16 %v65, %v64
    %v75 = vpack.c.bf16 %v67, %v66
    %v76 = vunpack.c.l.bf16 %v68
    %v77 = vunpack.c.h.bf16 %v68
    %v78 = vunpack.c.l.bf16 %v69
    %v79 = vunpack.c.h.bf16 %v69
    %v80 = vunpack.c.l.bf16 %v70
    %v81 = vunpack.c.h.bf16 %v70
    %v82 = vunpack.c.l.bf16 %v71
    %v83 = vunpack.c.h.bf16 %v71
    %v84 = vunpack.c.l.bf16 %v72
    %v85 = vunpack.c.h.bf16 %v72
    %v86 = vunpack.c.l.bf16 %v73
    %v87 = vunpack.c.h.bf16 %v73
    %v88 = vunpack.c.l.bf16 %v74
    %v89 = vunpack.c.h.bf16 %v74
    %v90 = vunpack.c.l.bf16 %v75
    %v91 = vunpack.c.h.bf16 %v75
    %v92 = vmul.f32 %v76, %v76
    %v93 = vmul.f32 %v77, %v77
    %v94 = vmul.f32 %v78, %v78
    %v95 = vmul.f32 %v79, %v79
    %v96 = vmul.f32 %v80, %v80
    %v97 = vmul.f32 %v81, %v81
    %v98 = vmul.f32 %v82, %v82
    %v99 = vmul.f32 %v83, %v83
    %v100 = vmul.f32 %v84, %v84
    %v101 = vmul.f32 %v85, %v85
    %v102 = vmul.f32 %v86, %v86
    %v103 = vmul.f32 %v87, %v87
    %v104 = vmul.f32 %v88, %v88
    %v105 = vmul.f32 %v89, %v89
    %v106 = vmul.f32 %v90, %v90
    %v107 = vmul.f32 %v91, %v91
    %108 = vadd.xlane.f32.xlu0 %v92
    %v109 = vpop.xlane.xlu0 %108
    %110 = vadd.xlane.f32.xlu0 %v93
    %v111 = vpop.xlane.xlu0 %110
    %112 = vadd.xlane.f32.xlu0 %v94
    %v113 = vpop.xlane.xlu0 %112
    %114 = vadd.xlane.f32.xlu0 %v95
    %v115 = vpop.xlane.xlu0 %114
    %116 = vadd.xlane.f32.xlu0 %v96
    %v117 = vpop.xlane.xlu0 %116
    %118 = vadd.xlane.f32.xlu0 %v97
    %v119 = vpop.xlane.xlu0 %118
    %120 = vadd.xlane.f32.xlu0 %v98
    %v121 = vpop.xlane.xlu0 %120
    %122 = vadd.xlane.f32.xlu0 %v99
    %v123 = vpop.xlane.xlu0 %122
    %124 = vadd.xlane.f32.xlu0 %v100
    %v125 = vpop.xlane.xlu0 %124
    %126 = vadd.xlane.f32.xlu0 %v101
    %v127 = vpop.xlane.xlu0 %126
    %128 = vadd.xlane.f32.xlu0 %v102
    %v129 = vpop.xlane.xlu0 %128
    %130 = vadd.xlane.f32.xlu0 %v103
    %v131 = vpop.xlane.xlu0 %130
    %132 = vadd.xlane.f32.xlu0 %v104
    %v133 = vpop.xlane.xlu0 %132
    %134 = vadd.xlane.f32.xlu0 %v105
    %v135 = vpop.xlane.xlu0 %134
    %136 = vadd.xlane.f32.xlu0 %v106
    %v137 = vpop.xlane.xlu0 %136
    %138 = vadd.xlane.f32.xlu0 %v107
    %v139 = vpop.xlane.xlu0 %138
    %v140 = vrsqrt.pop %v109
    %v141 = vrsqrt.pop %v111
    %v142 = vrsqrt.pop %v113
    %v143 = vrsqrt.pop %v115
    %v144 = vrsqrt.pop %v117
    %v145 = vrsqrt.pop %v119
    %v146 = vrsqrt.pop %v121
    %v147 = vrsqrt.pop %v123
    %v148 = vrsqrt.pop %v125
    %v149 = vrsqrt.pop %v127
    %v150 = vrsqrt.pop %v129
    %v151 = vrsqrt.pop %v131
    %v152 = vrsqrt.pop %v133
    %v153 = vrsqrt.pop %v135
    %v154 = vrsqrt.pop %v137
    %v155 = vrsqrt.pop %v139
    %vm156 = vcmp.gt.f32.partialorder %v109, 0.0
    %vm157 = vcmp.gt.f32.partialorder %v111, 0.0
    %vm158 = vcmp.gt.f32.partialorder %v113, 0.0
    %vm159 = vcmp.gt.f32.partialorder %v115, 0.0
    %vm160 = vcmp.gt.f32.partialorder %v117, 0.0
    %vm161 = vcmp.gt.f32.partialorder %v119, 0.0
    %vm162 = vcmp.gt.f32.partialorder %v121, 0.0
    %vm163 = vcmp.gt.f32.partialorder %v123, 0.0
    %vm164 = vcmp.gt.f32.partialorder %v125, 0.0
    %vm165 = vcmp.gt.f32.partialorder %v127, 0.0
    %vm166 = vcmp.gt.f32.partialorder %v129, 0.0
    %vm167 = vcmp.gt.f32.partialorder %v131, 0.0
    %vm168 = vcmp.gt.f32.partialorder %v133, 0.0
    %vm169 = vcmp.gt.f32.partialorder %v135, 0.0
    %vm170 = vcmp.gt.f32.partialorder %v137, 0.0
    %vm171 = vcmp.gt.f32.partialorder %v139, 0.0
    %v172 = vmul.f32 %v76, %v140
    %v173 = vmul.f32 %v77, %v141
    %v174 = vmul.f32 %v78, %v142
    %v175 = vmul.f32 %v79, %v143
    %v176 = vmul.f32 %v80, %v144
    %v177 = vmul.f32 %v81, %v145
    %v178 = vmul.f32 %v82, %v146
    %v179 = vmul.f32 %v83, %v147
    %v180 = vmul.f32 %v84, %v148
    %v181 = vmul.f32 %v85, %v149
    %v182 = vmul.f32 %v86, %v150
    %v183 = vmul.f32 %v87, %v151
    %v184 = vmul.f32 %v88, %v152
    %v185 = vmul.f32 %v89, %v153
    %v186 = vmul.f32 %v90, %v154
    %v187 = vmul.f32 %v91, %v155
    %v188 = vpack.c.bf16 %v173, %v172
    %v189 = vpack.c.bf16 %v175, %v174
    %v190 = vpack.c.bf16 %v177, %v176
    %v191 = vpack.c.bf16 %v179, %v178
    %v192 = vpack.c.bf16 %v181, %v180
    %v193 = vpack.c.bf16 %v183, %v182
    %v194 = vpack.c.bf16 %v185, %v184
    %v195 = vpack.c.bf16 %v187, %v186
    %v196 = vsel %vm156, 1, 0
    %v197 = vsel %vm157, 1, 0
    %v198 = vsel %vm158, 1, 0
    %v199 = vsel %vm159, 1, 0
    %v200 = vsel %vm160, 1, 0
    %v201 = vsel %vm161, 1, 0
    %v202 = vsel %vm162, 1, 0
    %v203 = vsel %vm163, 1, 0
    %v204 = vsel %vm164, 1, 0
    %v205 = vsel %vm165, 1, 0
    %v206 = vsel %vm166, 1, 0
    %v207 = vsel %vm167, 1, 0
    %v208 = vsel %vm168, 1, 0
    %v209 = vsel %vm169, 1, 0
    %v210 = vsel %vm170, 1, 0
    %v211 = vsel %vm171, 1, 0
    %vm212 = vcmp.eq.s32.totalorder %v196, 1
    %vm213 = vcmp.eq.s32.totalorder %v197, 1
    %vm214 = vcmp.eq.s32.totalorder %v198, 1
    %vm215 = vcmp.eq.s32.totalorder %v199, 1
    %vm216 = vcmp.eq.s32.totalorder %v200, 1
    %vm217 = vcmp.eq.s32.totalorder %v201, 1
    %vm218 = vcmp.eq.s32.totalorder %v202, 1
    %vm219 = vcmp.eq.s32.totalorder %v203, 1
    %vm220 = vcmp.eq.s32.totalorder %v204, 1
    %vm221 = vcmp.eq.s32.totalorder %v205, 1
    %vm222 = vcmp.eq.s32.totalorder %v206, 1
    %vm223 = vcmp.eq.s32.totalorder %v207, 1
    %vm224 = vcmp.eq.s32.totalorder %v208, 1
    %vm225 = vcmp.eq.s32.totalorder %v209, 1
    %vm226 = vcmp.eq.s32.totalorder %v210, 1
    %vm227 = vcmp.eq.s32.totalorder %v211, 1
    %vm228 = vmpackc.low %vm212, %vm212
    %vm229 = vmpackc.low %vm213, %vm213
    %vm230 = vmpackc.low %vm214, %vm214
    %vm231 = vmpackc.low %vm215, %vm215
    %vm232 = vmpackc.low %vm216, %vm216
    %vm233 = vmpackc.low %vm217, %vm217
    %vm234 = vmpackc.low %vm218, %vm218
    %vm235 = vmpackc.low %vm219, %vm219
    %vm236 = vmpackc.low %vm220, %vm220
    %vm237 = vmpackc.low %vm221, %vm221
    %vm238 = vmpackc.low %vm222, %vm222
    %vm239 = vmpackc.low %vm223, %vm223
    %vm240 = vmpackc.low %vm224, %vm224
    %vm241 = vmpackc.low %vm225, %vm225
    %vm242 = vmpackc.low %vm226, %vm226
    %vm243 = vmpackc.low %vm227, %vm227
    %v244 = vsel %vm228, 65537, 0
    %v245 = vsel %vm229, 65537, 0
    %v246 = vsel %vm230, 65537, 0
    %v247 = vsel %vm231, 65537, 0
    %v248 = vsel %vm232, 65537, 0
    %v249 = vsel %vm233, 65537, 0
    %v250 = vsel %vm234, 65537, 0
    %v251 = vsel %vm235, 65537, 0
    %v252 = vsel %vm236, 65537, 0
    %v253 = vsel %vm237, 65537, 0
    %v254 = vsel %vm238, 65537, 0
    %v255 = vsel %vm239, 65537, 0
    %v256 = vsel %vm240, 65537, 0
    %v257 = vsel %vm241, 65537, 0
    %v258 = vsel %vm242, 65537, 0
    %v259 = vsel %vm243, 65537, 0
    %v260 = vunpack.c.l.b16 %v244
    %v261 = vunpack.c.l.b16 %v245
    %v262 = vunpack.c.l.b16 %v246
    %v263 = vunpack.c.l.b16 %v247
    %v264 = vunpack.c.l.b16 %v248
    %v265 = vunpack.c.l.b16 %v249
    %v266 = vunpack.c.l.b16 %v250
    %v267 = vunpack.c.l.b16 %v251
    %v268 = vunpack.c.l.b16 %v252
    %v269 = vunpack.c.l.b16 %v253
    %v270 = vunpack.c.l.b16 %v254
    %v271 = vunpack.c.l.b16 %v255
    %v272 = vunpack.c.l.b16 %v256
    %v273 = vunpack.c.l.b16 %v257
    %v274 = vunpack.c.l.b16 %v258
    %v275 = vunpack.c.l.b16 %v259
    %v276 = vpack.c.b16 %v261, %v260
    %v277 = vpack.c.b16 %v263, %v262
    %v278 = vpack.c.b16 %v265, %v264
    %v279 = vpack.c.b16 %v267, %v266
    %v280 = vpack.c.b16 %v269, %v268
    %v281 = vpack.c.b16 %v271, %v270
    %v282 = vpack.c.b16 %v273, %v272
    %v283 = vpack.c.b16 %v275, %v274
    %vm284 = vcmp.ne.s16.totalorder %v276, 0
    %vm285 = vcmp.ne.s16.totalorder %v277, 0
    %vm286 = vcmp.ne.s16.totalorder %v278, 0
    %vm287 = vcmp.ne.s16.totalorder %v279, 0
    %vm288 = vcmp.ne.s16.totalorder %v280, 0
    %vm289 = vcmp.ne.s16.totalorder %v281, 0
    %vm290 = vcmp.ne.s16.totalorder %v282, 0
    %vm291 = vcmp.ne.s16.totalorder %v283, 0
    %v292 = vsel %vm284, %v188, 0
    %v293 = vsel %vm285, %v189, 0
    %v294 = vsel %vm286, %v190, 0
    %v295 = vsel %vm287, %v191, 0
    %v296 = vsel %vm288, %v192, 0
    %v297 = vsel %vm289, %v193, 0
    %v298 = vsel %vm290, %v194, 0
    %v299 = vsel %vm291, %v195, 0
    %v300 = vld [vmem:[#allocation2] sm:$0xff]
    %v301 = vld [vmem:[#allocation2 + $0x8] sm:$0xff]
    %v302 = vld [vmem:[#allocation2 + $0x10] sm:$0xff]
    %v303 = vld [vmem:[#allocation2 + $0x18] sm:$0xff]
    %v304 = vld [vmem:[#allocation2 + $0x20] sm:$0xff]
    %v305 = vld [vmem:[#allocation2 + $0x28] sm:$0xff]
    %v306 = vld [vmem:[#allocation2 + $0x30] sm:$0xff]
    %v307 = vld [vmem:[#allocation2 + $0x38] sm:$0xff]
    %v308 = vld [vmem:[#allocation2 + $0x40] sm:$0xff]
    %v309 = vld [vmem:[#allocation2 + $0x48] sm:$0xff]
    %v310 = vld [vmem:[#allocation2 + $0x50] sm:$0xff]
    %v311 = vld [vmem:[#allocation2 + $0x58] sm:$0xff]
    %v312 = vld [vmem:[#allocation2 + $0x60] sm:$0xff]
    %v313 = vld [vmem:[#allocation2 + $0x68] sm:$0xff]
    %v314 = vld [vmem:[#allocation2 + $0x70] sm:$0xff]
    %v315 = vld [vmem:[#allocation2 + $0x78] sm:$0xff]
    %316 = vxpose.xlu0.c.b16.start [1/8] %v292, 128
    %317 = vxpose.xlu0.c.b16.cont [2/8] %v293, 128
    %318 = vxpose.xlu0.c.b16.cont [3/8] %v294, 128
    %319 = vxpose.xlu0.c.b16.cont [4/8] %v295, 128
    %320 = vxpose.xlu0.c.b16.cont [5/8] %v296, 128
    %321 = vxpose.xlu0.c.b16.cont [6/8] %v297, 128
    %322 = vxpose.xlu0.c.b16.cont [7/8] %v298, 128
    %323 = vxpose.xlu0.c.b16.end [8/8] %v299, 128
    %v324 = vpop.trf.xlu0
    %v325 = vpop.trf.xlu0
    %v326 = vpop.trf.xlu0
    %v327 = vpop.trf.xlu0
    %v328 = vpop.trf.xlu0
    %v329 = vpop.trf.xlu0
    %v330 = vpop.trf.xlu0
    %v331 = vpop.trf.xlu0
    %332 = vmatprep.subr.bf16.mxu0 0
    %333 = vmatpush1.bf16.msra.mxu0 %v292
    %334 = vmatprep.subr.bf16.mxu0 0
    %335 = vmatpush1.bf16.msra.mxu0 %v293
    %336 = vmatprep.subr.bf16.mxu0 0
    %337 = vmatpush1.bf16.msra.mxu0 %v294
    %338 = vmatprep.subr.bf16.mxu0 0
    %339 = vmatpush1.bf16.msra.mxu0 %v295
    %340 = vmatprep.subr.bf16.mxu0 0
    %341 = vmatpush1.bf16.msra.mxu0 %v296
    %342 = vmatprep.subr.bf16.mxu0 0
    %343 = vmatpush1.bf16.msra.mxu0 %v297
    %344 = vmatprep.subr.bf16.mxu0 0
    %345 = vmatpush1.bf16.msra.mxu0 %v298
    %346 = vmatprep.subr.bf16.mxu0 0
    %347 = vmatpush1.bf16.msra.mxu0 %v299
    %348 = vmatprep.subr.bf16.mxu0 0
    %349 = vmatpush1.bf16.msra.mxu0 0
    %350 = vmatprep.subr.bf16.mxu0 0
    %351 = vmatpush1.bf16.msra.mxu0 0
    %352 = vmatprep.subr.bf16.mxu0 0
    %353 = vmatpush1.bf16.msra.mxu0 0
    %354 = vmatprep.subr.bf16.mxu0 0
    %355 = vmatpush1.bf16.msra.mxu0 0
    %356 = vmatprep.subr.bf16.mxu0 0
    %357 = vmatpush1.bf16.msra.mxu0 0
    %358 = vmatprep.subr.bf16.mxu0 0
    %359 = vmatpush1.bf16.msra.mxu0 0
    %360 = vmatprep.subr.bf16.mxu0 0
    %361 = vmatpush1.bf16.msra.mxu0 0
    %362 = vmatprep.subr.bf16.mxu0 0
    %363 = vmatpush1.bf16.msra.mxu0 0
    %364 = vmatprep.mubr.bf16.mxu0 0
    %365 = vmatmul.mubr.bf16.gmra.mrb[0].mxu0 %v324
    %v366 = vpop.f32.mrb[0].mxu0
    %v367 = vadd.f32 0.0, %v366
    %v368 = vpop.f32.mrb[0].mxu0
    %v369 = vpop.f32.mrb[0].mxu0
    %v370 = vadd.f32 0.0, %v369
    %v371 = vpop.f32.mrb[0].mxu0
    %372 = vmatprep.mubr.bf16.mxu0 0
    %373 = vmatmul.mubr.bf16.gmra.mrb[0].mxu0 %v325
    %v374 = vpop.f32.mrb[0].mxu0
    %v375 = vadd.f32 0.0, %v374
    %v376 = vpop.f32.mrb[0].mxu0
    %v377 = vpop.f32.mrb[0].mxu0
    %v378 = vadd.f32 0.0, %v377
    %v379 = vpop.f32.mrb[0].mxu0
    %380 = vmatprep.mubr.bf16.mxu0 0
    %381 = vmatmul.mubr.bf16.gmra.mrb[0].mxu0 %v326
    %v382 = vpop.f32.mrb[0].mxu0
    %v383 = vadd.f32 0.0, %v382
    %v384 = vpop.f32.mrb[0].mxu0
    %v385 = vpop.f32.mrb[0].mxu0
    %v386 = vadd.f32 0.0, %v385
    %v387 = vpop.f32.mrb[0].mxu0
    %388 = vmatprep.mubr.bf16.mxu0 0
    %389 = vmatmul.mubr.bf16.gmra.mrb[0].mxu0 %v327
    %v390 = vpop.f32.mrb[0].mxu0
    %v391 = vadd.f32 0.0, %v390
    %v392 = vpop.f32.mrb[0].mxu0
    %v393 = vpop.f32.mrb[0].mxu0
    %v394 = vadd.f32 0.0, %v393
    %v395 = vpop.f32.mrb[0].mxu0
    %396 = vmatprep.mubr.bf16.mxu0 0
    %397 = vmatmul.mubr.bf16.gmra.mrb[0].mxu0 %v328
    %v398 = vpop.f32.mrb[0].mxu0
    %v399 = vadd.f32 0.0, %v398
    %v400 = vpop.f32.mrb[0].mxu0
    %v401 = vpop.f32.mrb[0].mxu0
    %v402 = vadd.f32 0.0, %v401
    %v403 = vpop.f32.mrb[0].mxu0
    %404 = vmatprep.mubr.bf16.mxu0 0
    %405 = vmatmul.mubr.bf16.gmra.mrb[0].mxu0 %v329
    %v406 = vpop.f32.mrb[0].mxu0
    %v407 = vadd.f32 0.0, %v406
    %v408 = vpop.f32.mrb[0].mxu0
    %v409 = vpop.f32.mrb[0].mxu0
    %v410 = vadd.f32 0.0, %v409
    %v411 = vpop.f32.mrb[0].mxu0
    %412 = vmatprep.mubr.bf16.mxu0 0
    %413 = vmatmul.mubr.bf16.gmra.mrb[0].mxu0 %v330
    %v414 = vpop.f32.mrb[0].mxu0
    %v415 = vadd.f32 0.0, %v414
    %v416 = vpop.f32.mrb[0].mxu0
    %v417 = vpop.f32.mrb[0].mxu0
    %v418 = vadd.f32 0.0, %v417
    %v419 = vpop.f32.mrb[0].mxu0
    %420 = vmatprep.mubr.bf16.mxu0 0
    %421 = vmatmul.mubr.bf16.gmra.mrb[0].mxu0 %v331
    %v422 = vpop.f32.mrb[0].mxu0
    %v423 = vadd.f32 0.0, %v422
    %v424 = vpop.f32.mrb[0].mxu0
    %v425 = vpop.f32.mrb[0].mxu0
    %v426 = vadd.f32 0.0, %v425
    %v427 = vpop.f32.mrb[0].mxu0
    %428 = vdwg.mxu0
    %v429 = vadd.f32 %v300, %v367
    %v430 = vadd.f32 %v301, %v370
    %v431 = vadd.f32 %v302, %v375
    %v432 = vadd.f32 %v303, %v378
    %v433 = vadd.f32 %v304, %v383
    %v434 = vadd.f32 %v305, %v386
    %v435 = vadd.f32 %v306, %v391
    %v436 = vadd.f32 %v307, %v394
    %v437 = vadd.f32 %v308, %v399
    %v438 = vadd.f32 %v309, %v402
    %v439 = vadd.f32 %v310, %v407
    %v440 = vadd.f32 %v311, %v410
    %v441 = vadd.f32 %v312, %v415
    %v442 = vadd.f32 %v313, %v418
    %v443 = vadd.f32 %v314, %v423
    %v444 = vadd.f32 %v315, %v426
    %445 = vst [vmem:[#allocation2] sm:$0xff] %v429
    %446 = vst [vmem:[#allocation2 + $0x8] sm:$0xff] %v430
    %447 = vst [vmem:[#allocation2 + $0x10] sm:$0xff] %v431
    %448 = vst [vmem:[#allocation2 + $0x18] sm:$0xff] %v432
    %449 = vst [vmem:[#allocation2 + $0x20] sm:$0xff] %v433
    %450 = vst [vmem:[#allocation2 + $0x28] sm:$0xff] %v434
    %451 = vst [vmem:[#allocation2 + $0x30] sm:$0xff] %v435
    %452 = vst [vmem:[#allocation2 + $0x38] sm:$0xff] %v436
    %453 = vst [vmem:[#allocation2 + $0x40] sm:$0xff] %v437
    %454 = vst [vmem:[#allocation2 + $0x48] sm:$0xff] %v438
    %455 = vst [vmem:[#allocation2 + $0x50] sm:$0xff] %v439
    %456 = vst [vmem:[#allocation2 + $0x58] sm:$0xff] %v440
    %457 = vst [vmem:[#allocation2 + $0x60] sm:$0xff] %v441
    %458 = vst [vmem:[#allocation2 + $0x68] sm:$0xff] %v442
    %459 = vst [vmem:[#allocation2 + $0x70] sm:$0xff] %v443
    %460 = vst [vmem:[#allocation2 + $0x78] sm:$0xff] %v444
    // Predicated region
    $region14: #{tpu_custom_call.1} parent=1 // pred_check
      %p461 = pneg %p32
    $region15: #{tpu_custom_call.1} parent=1 // pred_check_branch
      %463 = sbr.rel (%p461) target = $region17
    $region16: #{tpu_custom_call.1} parent=1 // pred_region
      %v464 = vld [vmem:[#allocation2] sm:$0xff]
      %v465 = vld [vmem:[#allocation2 + $0x8] sm:$0xff]
      %v466 = vld [vmem:[#allocation2 + $0x10] sm:$0xff]
      %v467 = vld [vmem:[#allocation2 + $0x18] sm:$0xff]
      %v468 = vld [vmem:[#allocation2 + $0x20] sm:$0xff]
      %v469 = vld [vmem:[#allocation2 + $0x28] sm:$0xff]
      %v470 = vld [vmem:[#allocation2 + $0x30] sm:$0xff]
      %v471 = vld [vmem:[#allocation2 + $0x38] sm:$0xff]
      %v472 = vld [vmem:[#allocation2 + $0x40] sm:$0xff]
      %v473 = vld [vmem:[#allocation2 + $0x48] sm:$0xff]
      %v474 = vld [vmem:[#allocation2 + $0x50] sm:$0xff]
      %v475 = vld [vmem:[#allocation2 + $0x58] sm:$0xff]
      %v476 = vld [vmem:[#allocation2 + $0x60] sm:$0xff]
      %v477 = vld [vmem:[#allocation2 + $0x68] sm:$0xff]
      %v478 = vld [vmem:[#allocation2 + $0x70] sm:$0xff]
      %v479 = vld [vmem:[#allocation2 + $0x78] sm:$0xff]
      %v480 = vmul.f32 %v464, 0.0078125
      %v481 = vmul.f32 %v465, 0.0078125
      %v482 = vmul.f32 %v466, 0.0078125
      %v483 = vmul.f32 %v467, 0.0078125
      %v484 = vmul.f32 %v468, 0.0078125
      %v485 = vmul.f32 %v469, 0.0078125
      %v486 = vmul.f32 %v470, 0.0078125
      %v487 = vmul.f32 %v471, 0.0078125
      %v488 = vmul.f32 %v472, 0.0078125
      %v489 = vmul.f32 %v473, 0.0078125
      %v490 = vmul.f32 %v474, 0.0078125
      %v491 = vmul.f32 %v475, 0.0078125
      %v492 = vmul.f32 %v476, 0.0078125
      %v493 = vmul.f32 %v477, 0.0078125
      %v494 = vmul.f32 %v478, 0.0078125
      %v495 = vmul.f32 %v479, 0.0078125
      %v496 = vpack.c.bf16 %v481, %v480
      %v497 = vpack.c.bf16 %v483, %v482
      %v498 = vpack.c.bf16 %v485, %v484
      %v499 = vpack.c.bf16 %v487, %v486
      %v500 = vpack.c.bf16 %v489, %v488
      %v501 = vpack.c.bf16 %v491, %v490
      %v502 = vpack.c.bf16 %v493, %v492
      %v503 = vpack.c.bf16 %v495, %v494
      %v512 = vunpack.c.l.b16 %v496
      %v513 = vunpack.c.h.b16 %v496
      %v514 = vunpack.c.l.b16 %v497
      %v515 = vunpack.c.h.b16 %v497
      %v516 = vunpack.c.l.b16 %v498
      %v517 = vunpack.c.h.b16 %v498
      %v518 = vunpack.c.l.b16 %v499
      %v519 = vunpack.c.h.b16 %v499
      %v520 = vunpack.c.l.b16 %v500
      %v521 = vunpack.c.h.b16 %v500
      %v522 = vunpack.c.l.b16 %v501
      %v523 = vunpack.c.h.b16 %v501
      %v524 = vunpack.c.l.b16 %v502
      %v525 = vunpack.c.h.b16 %v502
      %v526 = vunpack.c.l.b16 %v503
      %v527 = vunpack.c.h.b16 %v503
      %v528 = vpack.c.b16 %v512, %v512
      %v529 = vpack.c.b16 %v513, %v513
      %v530 = vpack.c.b16 %v514, %v514
      %v531 = vpack.c.b16 %v515, %v515
      %v532 = vpack.c.b16 %v516, %v516
      %v533 = vpack.c.b16 %v517, %v517
      %v534 = vpack.c.b16 %v518, %v518
      %v535 = vpack.c.b16 %v519, %v519
      %v536 = vpack.c.b16 %v520, %v520
      %v537 = vpack.c.b16 %v521, %v521
      %v538 = vpack.c.b16 %v522, %v522
      %v539 = vpack.c.b16 %v523, %v523
      %v540 = vpack.c.b16 %v524, %v524
      %v541 = vpack.c.b16 %v525, %v525
      %v542 = vpack.c.b16 %v526, %v526
      %v543 = vpack.c.b16 %v527, %v527
      %560 = vst [vmem:[#allocation6] sm:$0xf] %v528
      %561 = vst [vmem:[#allocation6 + $0x4] sm:$0xf] %v529
      %562 = vst [vmem:[#allocation6 + $0x8] sm:$0xf] %v530
      %563 = vst [vmem:[#allocation6 + $0xc] sm:$0xf] %v531
      %564 = vst [vmem:[#allocation6 + $0x10] sm:$0xf] %v532
      %565 = vst [vmem:[#allocation6 + $0x14] sm:$0xf] %v533
      %566 = vst [vmem:[#allocation6 + $0x18] sm:$0xf] %v534
      %567 = vst [vmem:[#allocation6 + $0x1c] sm:$0xf] %v535
      %568 = vst [vmem:[#allocation6 + $0x20] sm:$0xf] %v536
      %569 = vst [vmem:[#allocation6 + $0x24] sm:$0xf] %v537
      %570 = vst [vmem:[#allocation6 + $0x28] sm:$0xf] %v538
      %571 = vst [vmem:[#allocation6 + $0x2c] sm:$0xf] %v539
      %572 = vst [vmem:[#allocation6 + $0x30] sm:$0xf] %v540
      %573 = vst [vmem:[#allocation6 + $0x34] sm:$0xf] %v541
      %574 = vst [vmem:[#allocation6 + $0x38] sm:$0xf] %v542
      %575 = vst [vmem:[#allocation6 + $0x3c] sm:$0xf] %v543
    $region17: #{tpu_custom_call.1} parent=1 // pred_fallthru
      _
    // Predicated region
    $region18: #{tpu_custom_call.1} parent=1 // pred_check
      _
    $region19: #{tpu_custom_call.1} parent=1 // pred_check_branch
      %577 = sbr.rel (0) target = $region21
    $region20: #{tpu_custom_call.1} parent=1 // pred_region
      %s579 = ssub.s32 1024, 1024
      %580 = vsyncadd [#allocation5], %s579
      %s581 = sshll.u32 [#allocation6], 4
      %s582 = int_to_ptr.vmem [resolvable:$true] %s581
      %587 = dma.vmem_to_hbm [thread:$0]  %s582, 1024, %s1, [#allocation5], 64, 64, 4
    $region21: #{tpu_custom_call.1} parent=1 // pred_fallthru
      _
    // Predicated region
    $region22: #{tpu_custom_call.1} parent=1 // pred_check
      _
    $region23: #{tpu_custom_call.1} parent=1 // pred_check_branch
      %589 = sbr.rel (0) target = $region25
    $region24: #{tpu_custom_call.1} parent=1 // pred_region
      %590 = dma.done [#allocation5], 1024
    $region25: #{tpu_custom_call.1} parent=1 // pred_fallthru
      _
    %591 = vsyncpa [#allocation4], 1
    %592 = vsyncpa [#allocation5], 1

</llo_original>
